<compile_context>
chip_gen: v7x
topology: tpu7x:2x2x1
jax: 0.10.0
libtpu: 0.0.40
codegen_flags: <defaults>
</compile_context>

<pallas_src>
import jax
import jax.numpy as jnp
from jax.experimental import pallas as pl
from jax.experimental.pallas import tpu as pltpu


def _round_up(a, m):
    return (a + m - 1) // m * m


def _fused_affine_kernel(s_ref, t_ref, ld_ref, x_ref, z_ref, sum_ld_ref):
    """One (tile_b, tile_d) tile:  z = x * S + T,  sum_ld = broadcast(ld_row).

    s_ref, t_ref, ld_ref : (1, tile_d) composed parameters (f32, resident)
    x_ref                : (tile_b, tile_d) input tile
    z_ref, sum_ld_ref    : (tile_b, tile_d) output tiles
    """
    x = x_ref[...].astype(jnp.float32)
    z_ref[...] = (x * s_ref[...] + t_ref[...]).astype(z_ref.dtype)
    sum_ld_ref[...] = jnp.broadcast_to(ld_ref[...], sum_ld_ref.shape)


def _pick_tiles(B, D_pad, x_itemsize, vmem_budget_bytes=44 * 1024 * 1024):
    """Pick (tile_b, tile_d) sized in bytes against the pipelined-VMEM budget.

    Per grid step the pipeline double-buffers x and z (x dtype) and the f32
    sum_ld output, i.e. 2 * (2*itemsize + 4) bytes per tile element.
    """
    per_elem = 2 * (2 * x_itemsize + 4)
    max_elems = max(8 * 128, vmem_budget_bytes // per_elem)

    # Prefer full-D row slabs; tile D only if <64 rows would fit the budget.
    tile_d = D_pad
    if 64 * D_pad > max_elems:
        tile_d = max(128, ((max_elems // 64) // 128) * 128)
        tile_d = min(tile_d, D_pad)

    tile_b = max(8, (max_elems // tile_d) // 8 * 8)
    tile_b = min(tile_b, _round_up(B, 8))

    # v7x megacore: make sure there are >= 2 grid steps when the batch allows,
    # so the "parallel" axes actually split work across both TensorCores.
    if pl.cdiv(B, tile_b) * pl.cdiv(D_pad, tile_d) < 2 and B > 8:
        tile_b = max(8, _round_up(pl.cdiv(B, 2), 8))
    return tile_b, tile_d


def flow_composable_1d(x, log_scales, shifts, *, tile_b=None, tile_d=None):
    """x: (B, D); log_scales/shifts: (K, D) -> (z, sum_log_dz_by_dx)."""
    B, D = x.shape
    K, Dp = log_scales.shape
    assert Dp == D and shifts.shape == (K, D)

    # ---- fold the K affine flows into a single affine map (wrapper, O(K*D)) ----
    ls = log_scales.astype(jnp.float32)
    sh = shifts.astype(jnp.float32)
    ld_row = jnp.sum(ls, axis=0)                 # (D,)  x-independent log-det row
    S = jnp.exp(ld_row)                          # exp(sum) — tighter than prod(exp)
    scales = jnp.exp(ls)                         # (K, D)
    T = jnp.zeros((D,), dtype=jnp.float32)
    for k in range(K):                           # left-to-right, matches module order
        T = T * scales[k] + sh[k]

    # ---- lane-dense layout: pad D to a multiple of 128 if needed ----
    D_pad = _round_up(D, 128)
    if D_pad != D:
        x_k = jnp.pad(x, ((0, 0), (0, D_pad - D)))
        S_k = jnp.pad(S, (0, D_pad - D), constant_values=1.0)
        T_k = jnp.pad(T, (0, D_pad - D))
        ld_k = jnp.pad(ld_row, (0, D_pad - D))
    else:
        x_k, S_k, T_k, ld_k = x, S, T, ld_row
    S_k = S_k.reshape(1, D_pad)
    T_k = T_k.reshape(1, D_pad)
    ld_k = ld_k.reshape(1, D_pad)

    # ---- tile selection (bytes-based) ----
    auto_tb, auto_td = _pick_tiles(B, D_pad, jnp.dtype(x.dtype).itemsize)
    tb = auto_tb if tile_b is None else tile_b
    td = auto_td if tile_d is None else tile_d

    grid = (pl.cdiv(B, tb), pl.cdiv(D_pad, td))
    param_spec = pl.BlockSpec((1, td), lambda i, j: (0, j))
    tile_spec = pl.BlockSpec((tb, td), lambda i, j: (i, j))

    itemsize = jnp.dtype(x.dtype).itemsize
    cost = pl.CostEstimate(
        flops=2 * B * D_pad,
        transcendentals=0,
        bytes_accessed=B * D_pad * (2 * itemsize + 4) + 3 * D_pad * 4,
    )

    z, sum_ld = pl.pallas_call(
        _fused_affine_kernel,
        out_shape=(
            jax.ShapeDtypeStruct((B, D_pad), x.dtype),
            jax.ShapeDtypeStruct((B, D_pad), jnp.float32),
        ),
        grid_spec=pl.GridSpec(
            grid=grid,
            in_specs=[param_spec, param_spec, param_spec, tile_spec],
            out_specs=(tile_spec, tile_spec),
        ),
        compiler_params=pltpu.CompilerParams(
            dimension_semantics=("parallel", "parallel"),
            vmem_limit_bytes=48 * 1024 * 1024,
        ),
        cost_estimate=cost,
    )(S_k, T_k, ld_k, x_k)

    if D_pad != D:
        z = z[:, :D]
        sum_ld = sum_ld[:, :D]
    return z, sum_ld


def flow_composable_1d_reference(x, log_scales, shifts):
    """Pure-JAX reference matching the PyTorch forward exactly (sequential)."""
    z = x
    sum_ld = 0
    K = log_scales.shape[0]
    for k in range(K):
        log_s = log_scales[k]
        z = z * jnp.exp(log_s) + shifts[k]
        sum_ld = sum_ld + jnp.broadcast_to(log_s, z.shape)
    return z, sum_ld


if __name__ == "__main__":
    key = jax.random.PRNGKey(0)
    kx, ks, kb = jax.random.split(key, 3)

    B, D, K = 16, 128, 3          # small shapes; (B, D) aligned to (8, 128) tiles
    x = jax.random.normal(kx, (B, D), dtype=jnp.float32)
    # Deterministic synthetic flow parameters (not a checkpoint load).
    log_scales = 0.1 * jax.random.normal(ks, (K, D), dtype=jnp.float32)
    shifts = 0.1 * jax.random.normal(kb, (K, D), dtype=jnp.float32)

    z, sum_ld = flow_composable_1d(x, log_scales, shifts)
    z = jax.block_until_ready(z)
    sum_ld = jax.block_until_ready(sum_ld)

    z_ref, ld_ref = flow_composable_1d_reference(x, log_scales, shifts)
    assert jnp.allclose(z, z_ref, atol=1e-5, rtol=1e-5), "z mismatch"
    assert jnp.allclose(sum_ld, ld_ref, atol=1e-5, rtol=1e-5), "logdet mismatch"

    print("KERNEL_OK")
</pallas_src>

<mosaic_0001>
module attributes {stable_mosaic.version = 11 : i64} {
  func.func @_fused_affine_kernel(%arg0: i32, %arg1: i32, %arg2: memref<1x128xf32, #tpu.memory_space<vmem>>, %arg3: memref<1x128xf32, #tpu.memory_space<vmem>>, %arg4: memref<1x128xf32, #tpu.memory_space<vmem>>, %arg5: memref<8x128xf32, #tpu.memory_space<vmem>>, %arg6: memref<8x128xf32, #tpu.memory_space<vmem>>, %arg7: memref<8x128xf32, #tpu.memory_space<vmem>>) attributes {dimension_semantics = [#tpu.dimension_semantics<parallel>, #tpu.dimension_semantics<parallel>], iteration_bounds = array<i64: 2, 1>, scalar_prefetch = 0 : i64, scratch_operands = 0 : i64, tpu.core_type = #tpu.core_type<tc>, window_params = [{transform_indices = @transform_0, window_bounds = array<i64: 1, 128>}, {transform_indices = @transform_1, window_bounds = array<i64: 1, 128>}, {transform_indices = @transform_2, window_bounds = array<i64: 1, 128>}, {transform_indices = @transform_3, window_bounds = array<i64: 8, 128>}, {transform_indices = @transform_4, window_bounds = array<i64: 8, 128>}, {transform_indices = @transform_5, window_bounds = array<i64: 8, 128>}]} {
    %c0 = arith.constant 0 : index
    %c0_0 = arith.constant 0 : index
    %0 = vector.load %arg5[%c0, %c0_0] : memref<8x128xf32, #tpu.memory_space<vmem>>, vector<8x128xf32>
    %c0_1 = arith.constant 0 : index
    %c0_2 = arith.constant 0 : index
    %1 = vector.load %arg2[%c0_1, %c0_2] : memref<1x128xf32, #tpu.memory_space<vmem>>, vector<1x128xf32>
    %2 = vector.broadcast %1 : vector<1x128xf32> to vector<8x128xf32>
    %3 = arith.mulf %0, %2 : vector<8x128xf32>
    %c0_3 = arith.constant 0 : index
    %c0_4 = arith.constant 0 : index
    %4 = vector.load %arg3[%c0_3, %c0_4] : memref<1x128xf32, #tpu.memory_space<vmem>>, vector<1x128xf32>
    %5 = vector.broadcast %4 : vector<1x128xf32> to vector<8x128xf32>
    %6 = arith.addf %3, %5 : vector<8x128xf32>
    %c0_5 = arith.constant 0 : index
    %c0_6 = arith.constant 0 : index
    %7 = vector.load %arg6[%c0_5, %c0_6] : memref<8x128xf32, #tpu.memory_space<vmem>>, vector<8x128xf32>
    tpu.vector_store %arg6[%c0_5, %c0_6], %6 {strides = array<i32>} : memref<8x128xf32, #tpu.memory_space<vmem>>, vector<8x128xf32>,
    %c0_7 = arith.constant 0 : index
    %c0_8 = arith.constant 0 : index
    %8 = vector.load %arg4[%c0_7, %c0_8] : memref<1x128xf32, #tpu.memory_space<vmem>>, vector<1x128xf32>
    %9 = vector.shape_cast %8 : vector<1x128xf32> to vector<1x128xf32>
    %10 = vector.broadcast %9 : vector<1x128xf32> to vector<8x128xf32>
    %c0_9 = arith.constant 0 : index
    %c0_10 = arith.constant 0 : index
    %11 = vector.load %arg7[%c0_9, %c0_10] : memref<8x128xf32, #tpu.memory_space<vmem>>, vector<8x128xf32>
    tpu.vector_store %arg7[%c0_9, %c0_10], %10 {strides = array<i32>} : memref<8x128xf32, #tpu.memory_space<vmem>>, vector<8x128xf32>,
    return
  }
  func.func @transform_0(%arg0: i32, %arg1: i32) -> (i32, i32) {
    %c0_i32 = arith.constant 0 : i32
    %c0_i32_0 = arith.constant 0 : i32
    return %c0_i32, %arg1 : i32, i32
  }
  func.func @transform_1(%arg0: i32, %arg1: i32) -> (i32, i32) {
    %c0_i32 = arith.constant 0 : i32
    %c0_i32_0 = arith.constant 0 : i32
    return %c0_i32, %arg1 : i32, i32
  }
  func.func @transform_2(%arg0: i32, %arg1: i32) -> (i32, i32) {
    %c0_i32 = arith.constant 0 : i32
    %c0_i32_0 = arith.constant 0 : i32
    return %c0_i32, %arg1 : i32, i32
  }
  func.func @transform_3(%arg0: i32, %arg1: i32) -> (i32, i32) {
    %c0_i32 = arith.constant 0 : i32
    return %arg0, %arg1 : i32, i32
  }
  func.func @transform_4(%arg0: i32, %arg1: i32) -> (i32, i32) {
    %c0_i32 = arith.constant 0 : i32
    return %arg0, %arg1 : i32, i32
  }
  func.func @transform_5(%arg0: i32, %arg1: i32) -> (i32, i32) {
    %c0_i32 = arith.constant 0 : i32
    return %arg0, %arg1 : i32, i32
  }
}

</mosaic_0001>

<llo_original>
// kernel: tpu_custom_call.1
$region0: #{tpu_custom_call.1}
  #allocation0 [shape = 'u32[]', space=smem, size = 0x4, offset = 0x4, fixed_abs, tag = 'smem constant byte address 0x4 - core index']
  #allocation1 [shape = 'u32[144,128]{1,0:T(1,128)}', space=vmem, size = 0x12000, scoped, tag = 'internal scratch']
  %s0 = inlined_call_operand.hbm [shape: f32[1,128], index: 0, kind: input, shape index: {}]
  %s1 = inlined_call_operand.vmem [shape: f32[1,128], index: 1, kind: input, shape index: {}]
  %s2 = inlined_call_operand.vmem [shape: f32[1,128], index: 2, kind: input, shape index: {}]
  %s3 = inlined_call_operand.hbm [shape: f32[16,128], index: 3, kind: input, shape index: {}]
  %s4 = inlined_call_operand.hbm [shape: f32[16,128], index: 4, kind: output, shape index: {0}]
  %s5 = inlined_call_operand.hbm [shape: f32[16,128], index: 5, kind: output, shape index: {1}]
  %6 = xla_tuple %s4, %s5
  %s7 = sld [smem:[#allocation0]]
  $region65: #{tpu_custom_call.1} parent=0
    _
  %s9 = ssub.s32 1, %s7
  %s10 = scalar_select 0, %s9, %s7
  $region1: #{tpu_custom_call.1} parent=0
    #allocation2 [shape = 'u8[512]{0}', space=vmem, size = 0x400, scoped, tag = 'input window, operand 0, single buffered']
    #allocation3 [shape = 's32[2]{0}', space=sflag, size = 0x8, scoped, tag = 'scoped memory for tpu_custom_call.1']
    #allocation4 [shape = 's32[2]{0}', space=sflag, size = 0x8, scoped, tag = 'scoped memory for tpu_custom_call.1']
    #allocation5 [shape = 'u8[8192]{0}', space=vmem, size = 0x2000, scoped, tag = 'input window, operand 3']
    #allocation6 [shape = 's32[2]{0}', space=sflag, size = 0x8, scoped, tag = 'scoped memory for tpu_custom_call.1']
    #allocation7 [shape = 'u8[8192]{0}', space=vmem, size = 0x2000, scoped, tag = 'output window, operand 0']
    #allocation8 [shape = 'u8[8192]{0}', space=vmem, size = 0x2000, scoped, tag = 'output window, operand 1']
    #allocation9 [shape = 's32[2]{0}', space=sflag, size = 0x8, scoped, tag = 'scoped memory for tpu_custom_call.1']
    %11 = vsyncpa [#allocation3], 0
    %12 = vsyncpa [#allocation6], 0
    %s13 = scalar_lea.sflag [#allocation6], 1
    %14 = vsyncpa %s13, 0
    %15 = vsyncpa [#allocation4], 0
    %s16 = scalar_lea.sflag [#allocation4], 1
    %17 = vsyncpa %s16, 0
    %18 = vsyncpa [#allocation9], 0
    %s19 = scalar_lea.sflag [#allocation9], 1
    %20 = vsyncpa %s19, 0
    loop: start=0, step=1, limit=4
    $region2: #{tpu_custom_call.1} parent=1 // loop_pre_header
      _
    $region3: #{tpu_custom_call.1} parent=1 // loop_header
      %s22 = sphi 0, %s26
      %p23 = scmp.ge.s32.totalorder %s22, 4
      %s29 = sphi 0, %s41
      %s30 = sphi 0, %s37
      %s31 = sphi 0, %s29
      %s32 = sphi 0, %s30
      %s33 = sphi 0, %s31
      %s34 = sphi 0, %s32
      %s44 = sphi 0, %s46
      %s47 = sphi 0, %s44
      %s48 = sphi 0, %s47
      %s64 = sphi 0, %s48
      %s70 = sphi 0, %s72
      %s73 = sphi 0, %s70
      %s74 = sphi 0, %s73
      %s90 = sphi 0, %s74
      %s96 = sphi 0, %s98
      %s99 = sphi 0, %s96
      %s100 = sphi 0, %s99
      %s116 = sphi 0, %s100
      %s124 = sphi 0, %s126
      %s127 = sphi 0, %s124
      %s128 = sphi 0, %s127
      %s144 = sphi 0, %s128
      %s152 = sphi 0, %s154
      %s155 = sphi 0, %s152
      %s156 = sphi 0, %s155
      %s172 = sphi 0, %s156
      %s180 = sphi 0, %s182
      %s183 = sphi 0, %s180
      %s184 = sphi 0, %s183
      %s200 = sphi 0, %s184
    $region4: #{tpu_custom_call.1} parent=1 // loop_header_branch
      %25 = sbr.rel (%p23) target = $region8
    $region5: #{tpu_custom_call.1} parent=1 // loop_body
      %s27 = ssub.s32 %s22, 1
      %s28 = ssub.s32 %s22, 2
      %s35 = sadd.s32 1, %s30
      %p36 = scmp.ge.s32.totalorder %s35, 1
      %s37 = scalar_select %p36, 0, %s35
      %s38 = sadd.s32 1, %s29
      %s39 = scalar_select %p36, %s38, %s29
      %p40 = scmp.ge.s32.totalorder %s39, 2
      %s41 = scalar_select %p40, 0, %s39
      %s42 = ssub.s32 %s30, %s37
      %p43 = scmp.eq.s32.totalorder %s42, 0
      %s45 = sadd.s32 %s44, 1
      %s46 = scalar_select %p43, %s44, %s45
      %p49 = pneg %p43
      %p50 = scmp.eq.s32.totalorder %s22, 1
      %p51 = por %p49, %p50
      %p52 = scmp.ne.s32.totalorder %s44, %s47
      %p53 = scmp.eq.s32.totalorder %s22, 0
      %p54 = por %p52, %p53
      %p55 = scmp.ne.s32.totalorder %s44, %s47
      %p56 = scmp.eq.s32.totalorder %s27, 1
      %p57 = por %p55, %p56
      %p58 = scmp.ne.s32.totalorder %s47, %s48
      %p59 = scmp.eq.s32.totalorder %s27, 0
      %p60 = por %p58, %p59
      %p61 = scmp.ne.s32.totalorder %s47, %s48
      %p62 = scmp.eq.s32.totalorder %s28, 1
      %p63 = por %p61, %p62
      %p65 = scmp.ne.s32.totalorder %s48, %s64
      %p66 = scmp.eq.s32.totalorder %s28, 0
      %p67 = por %p65, %p66
      %s68 = ssub.s32 %s30, %s37
      %p69 = scmp.eq.s32.totalorder %s68, 0
      %s71 = sadd.s32 %s70, 1
      %s72 = scalar_select %p69, %s70, %s71
      %p75 = pneg %p69
      %p76 = scmp.eq.s32.totalorder %s22, 1
      %p77 = por %p75, %p76
      %p78 = scmp.ne.s32.totalorder %s70, %s73
      %p79 = scmp.eq.s32.totalorder %s22, 0
      %p80 = por %p78, %p79
      %p81 = scmp.ne.s32.totalorder %s70, %s73
      %p82 = scmp.eq.s32.totalorder %s27, 1
      %p83 = por %p81, %p82
      %p84 = scmp.ne.s32.totalorder %s73, %s74
      %p85 = scmp.eq.s32.totalorder %s27, 0
      %p86 = por %p84, %p85
      %p87 = scmp.ne.s32.totalorder %s73, %s74
      %p88 = scmp.eq.s32.totalorder %s28, 1
      %p89 = por %p87, %p88
      %p91 = scmp.ne.s32.totalorder %s74, %s90
      %p92 = scmp.eq.s32.totalorder %s28, 0
      %p93 = por %p91, %p92
      %s94 = ssub.s32 %s30, %s37
      %p95 = scmp.eq.s32.totalorder %s94, 0
      %s97 = sadd.s32 %s96, 1
      %s98 = scalar_select %p95, %s96, %s97
      %p101 = pneg %p95
      %p102 = scmp.eq.s32.totalorder %s22, 1
      %p103 = por %p101, %p102
      %p104 = scmp.ne.s32.totalorder %s96, %s99
      %p105 = scmp.eq.s32.totalorder %s22, 0
      %p106 = por %p104, %p105
      %p107 = scmp.ne.s32.totalorder %s96, %s99
      %p108 = scmp.eq.s32.totalorder %s27, 1
      %p109 = por %p107, %p108
      %p110 = scmp.ne.s32.totalorder %s99, %s100
      %p111 = scmp.eq.s32.totalorder %s27, 0
      %p112 = por %p110, %p111
      %p113 = scmp.ne.s32.totalorder %s99, %s100
      %p114 = scmp.eq.s32.totalorder %s28, 1
      %p115 = por %p113, %p114
      %p117 = scmp.ne.s32.totalorder %s100, %s116
      %p118 = scmp.eq.s32.totalorder %s28, 0
      %p119 = por %p117, %p118
      %s120 = ssub.s32 %s29, %s41
      %s121 = ssub.s32 %s30, %s37
      %s122 = sor.u32 %s120, %s121
      %p123 = scmp.eq.s32.totalorder %s122, 0
      %s125 = sadd.s32 %s124, 1
      %s126 = scalar_select %p123, %s124, %s125
      %p129 = pneg %p123
      %p130 = scmp.eq.s32.totalorder %s22, 1
      %p131 = por %p129, %p130
      %p132 = scmp.ne.s32.totalorder %s124, %s127
      %p133 = scmp.eq.s32.totalorder %s22, 0
      %p134 = por %p132, %p133
      %p135 = scmp.ne.s32.totalorder %s124, %s127
      %p136 = scmp.eq.s32.totalorder %s27, 1
      %p137 = por %p135, %p136
      %p138 = scmp.ne.s32.totalorder %s127, %s128
      %p139 = scmp.eq.s32.totalorder %s27, 0
      %p140 = por %p138, %p139
      %p141 = scmp.ne.s32.totalorder %s127, %s128
      %p142 = scmp.eq.s32.totalorder %s28, 1
      %p143 = por %p141, %p142
      %p145 = scmp.ne.s32.totalorder %s128, %s144
      %p146 = scmp.eq.s32.totalorder %s28, 0
      %p147 = por %p145, %p146
      %s148 = ssub.s32 %s29, %s41
      %s149 = ssub.s32 %s30, %s37
      %s150 = sor.u32 %s148, %s149
      %p151 = scmp.eq.s32.totalorder %s150, 0
      %s153 = sadd.s32 %s152, 1
      %s154 = scalar_select %p151, %s152, %s153
      %p157 = pneg %p151
      %p158 = scmp.eq.s32.totalorder %s22, 1
      %p159 = por %p157, %p158
      %p160 = scmp.ne.s32.totalorder %s152, %s155
      %p161 = scmp.eq.s32.totalorder %s22, 0
      %p162 = por %p160, %p161
      %p163 = scmp.ne.s32.totalorder %s152, %s155
      %p164 = scmp.eq.s32.totalorder %s27, 1
      %p165 = por %p163, %p164
      %p166 = scmp.ne.s32.totalorder %s155, %s156
      %p167 = scmp.eq.s32.totalorder %s27, 0
      %p168 = por %p166, %p167
      %p169 = scmp.ne.s32.totalorder %s155, %s156
      %p170 = scmp.eq.s32.totalorder %s28, 1
      %p171 = por %p169, %p170
      %p173 = scmp.ne.s32.totalorder %s156, %s172
      %p174 = scmp.eq.s32.totalorder %s28, 0
      %p175 = por %p173, %p174
      %s176 = ssub.s32 %s29, %s41
      %s177 = ssub.s32 %s30, %s37
      %s178 = sor.u32 %s176, %s177
      %p179 = scmp.eq.s32.totalorder %s178, 0
      %s181 = sadd.s32 %s180, 1
      %s182 = scalar_select %p179, %s180, %s181
      %p185 = pneg %p179
      %p186 = scmp.eq.s32.totalorder %s22, 1
      %p187 = por %p185, %p186
      %p188 = scmp.ne.s32.totalorder %s180, %s183
      %p189 = scmp.eq.s32.totalorder %s22, 0
      %p190 = por %p188, %p189
      %p191 = scmp.ne.s32.totalorder %s180, %s183
      %p192 = scmp.eq.s32.totalorder %s27, 1
      %p193 = por %p191, %p192
      %p194 = scmp.ne.s32.totalorder %s183, %s184
      %p195 = scmp.eq.s32.totalorder %s27, 0
      %p196 = por %p194, %p195
      %p197 = scmp.ne.s32.totalorder %s183, %s184
      %p198 = scmp.eq.s32.totalorder %s28, 1
      %p199 = por %p197, %p198
      %p201 = scmp.ne.s32.totalorder %s184, %s200
      %p202 = scmp.eq.s32.totalorder %s28, 0
      %p203 = por %p201, %p202
      %p204 = scmp.le.s32.totalorder 1, %s22
      %p205 = scmp.lt.s32.totalorder %s22, 3
      %p206 = pnand %p204, %p205
      %p207 = pneg %p206
      // Predicated region
      $region9: #{tpu_custom_call.1} parent=5 // pred_check
        _
      $region10: #{tpu_custom_call.1} parent=5 // pred_check_branch
        %209 = sbr.rel (%p206) target = $region12
      $region11: #{tpu_custom_call.1} parent=5 // pred_region
        %s210 = ssub.s32 %s22, 1
        // Predicated region
        $region13: #{tpu_custom_call.1} parent=11 // pred_check
          %p211 = pneg %p60
        $region14: #{tpu_custom_call.1} parent=11 // pred_check_branch
          %213 = sbr.rel (%p211) target = $region16
        $region15: #{tpu_custom_call.1} parent=11 // pred_region
          %s215 = ssub.s32 16, 16
          %216 = vsyncadd [#allocation3], %s215
          %s217 = smul.addr %s32, 16
          %s218 = scalar_lea.hbm %s0, %s217
          %s220 = sshll.u32 [#allocation2], 4
          %s221 = int_to_ptr.vmem [resolvable:$true] %s220
          %223 = dma.hbm_to_vmem [thread:$0]  %s218, 16, %s221, [#allocation3]
        $region16: #{tpu_custom_call.1} parent=11 // pred_fallthru
          _
        // Predicated region
        $region17: #{tpu_custom_call.1} parent=11 // pred_check
          %p224 = pneg %p86
        $region18: #{tpu_custom_call.1} parent=11 // pred_check_branch
          %226 = sbr.rel (%p224) target = $region20
        $region19: #{tpu_custom_call.1} parent=11 // pred_region
          %p227 = scmp.lt.s32.totalorder %s32, 0
          %s228 = scalar_select %p227, %s32, 0
          %s229 = scalar_lea.vmem %s1, %s228
        $region20: #{tpu_custom_call.1} parent=11 // pred_fallthru
          _
        // Predicated region
        $region21: #{tpu_custom_call.1} parent=11 // pred_check
          %p230 = pneg %p112
        $region22: #{tpu_custom_call.1} parent=11 // pred_check_branch
          %232 = sbr.rel (%p230) target = $region24
        $region23: #{tpu_custom_call.1} parent=11 // pred_region
          %p233 = scmp.lt.s32.totalorder %s32, 0
          %s234 = scalar_select %p233, %s32, 0
          %s235 = scalar_lea.vmem %s2, %s234
        $region24: #{tpu_custom_call.1} parent=11 // pred_fallthru
          _
      $region12: #{tpu_custom_call.1} parent=5 // pred_fallthru
        _
      %p236 = scmp.lt.s32.totalorder %s22, 2
      // Predicated region
      $region25: #{tpu_custom_call.1} parent=5 // pred_check
        %p237 = pneg %p236
      $region26: #{tpu_custom_call.1} parent=5 // pred_check_branch
        %239 = sbr.rel (%p237) target = $region28
      $region27: #{tpu_custom_call.1} parent=5 // pred_region
        // Predicated region
        $region29: #{tpu_custom_call.1} parent=27 // pred_check
          %p240 = pneg %p134
        $region30: #{tpu_custom_call.1} parent=27 // pred_check_branch
          %242 = sbr.rel (%p240) target = $region32
        $region31: #{tpu_custom_call.1} parent=27 // pred_region
          %s243 = sand.u32 %s124, 1
          %s244 = scalar_lea.sflag [#allocation6], %s243
          %s245 = sand.u32 %s124, 1
          %s246 = smul.addr %s245, 8
          %s247 = scalar_lea.vmem [#allocation5], %s246
          %s249 = ssub.s32 128, 128
          %250 = vsyncadd %s244, %s249
          %s251 = sadd.s32 %s30, %s29
          %s252 = smul.addr %s251, 128
          %s253 = scalar_lea.hbm %s3, %s252
          %s255 = sshll.u32 %s247, 4
          %s256 = int_to_ptr.vmem [resolvable:$true] %s255
          %258 = dma.hbm_to_vmem [thread:$0]  %s253, 128, %s256, %s244
        $region32: #{tpu_custom_call.1} parent=27 // pred_fallthru
          _
      $region28: #{tpu_custom_call.1} parent=5 // pred_fallthru
        _
      %p259 = scmp.le.s32.totalorder 1, %s22
      %p260 = scmp.lt.s32.totalorder %s22, 3
      %p261 = pnand %p259, %p260
      %p262 = pneg %p261
      // Predicated region
      $region33: #{tpu_custom_call.1} parent=5 // pred_check
        _
      $region34: #{tpu_custom_call.1} parent=5 // pred_check_branch
        %264 = sbr.rel (%p261) target = $region36
      $region35: #{tpu_custom_call.1} parent=5 // pred_region
        %s265 = ssub.s32 %s22, 1
        // Predicated region
        $region37: #{tpu_custom_call.1} parent=35 // pred_check
          %p266 = pneg %p60
        $region38: #{tpu_custom_call.1} parent=35 // pred_check_branch
          %268 = sbr.rel (%p266) target = $region40
        $region39: #{tpu_custom_call.1} parent=35 // pred_region
          %269 = dma.done [#allocation3], 16
        $region40: #{tpu_custom_call.1} parent=35 // pred_fallthru
          _
        %s270 = sand.u32 %s127, 1
        %s271 = scalar_lea.sflag [#allocation6], %s270
        %s272 = sand.u32 %s127, 1
        %s273 = smul.addr %s272, 8
        %s274 = scalar_lea.vmem [#allocation5], %s273
        // Predicated region
        $region41: #{tpu_custom_call.1} parent=35 // pred_check
          %p275 = pneg %p140
        $region42: #{tpu_custom_call.1} parent=35 // pred_check_branch
          %277 = sbr.rel (%p275) target = $region44
        $region43: #{tpu_custom_call.1} parent=35 // pred_region
          %278 = dma.done %s271, 128
        $region44: #{tpu_custom_call.1} parent=35 // pred_fallthru
          _
        %p279 = pneg %p60
        %p280 = pneg %p57
        %p281 = scmp.lt.s32.totalorder %s32, 0
        %s282 = scalar_select %p281, %s32, 0
        %s283 = scalar_lea.vmem %s1, %s282
        %p284 = pneg %p86
        %p285 = pneg %p83
        %p286 = scmp.lt.s32.totalorder %s32, 0
        %s287 = scalar_select %p286, %s32, 0
        %s288 = scalar_lea.vmem %s2, %s287
        %p289 = pneg %p112
        %p290 = pneg %p109
        %s291 = sand.u32 %s127, 1
        %s292 = scalar_lea.sflag [#allocation6], %s291
        %s293 = sand.u32 %s127, 1
        %s294 = smul.addr %s293, 8
        %s295 = scalar_lea.vmem [#allocation5], %s294
        %p296 = pneg %p140
        %p297 = pneg %p137
        %p298 = pneg %p168
        %p299 = pneg %p165
        %s300 = sand.u32 %s155, 1
        %s301 = scalar_lea.sflag [#allocation4], %s300
        %s302 = sand.u32 %s155, 1
        %s303 = smul.addr %s302, 8
        %s304 = scalar_lea.vmem [#allocation7], %s303
        %p305 = pneg %p196
        %p306 = pneg %p193
        %s307 = sand.u32 %s183, 1
        %s308 = scalar_lea.sflag [#allocation9], %s307
        %s309 = sand.u32 %s183, 1
        %s310 = smul.addr %s309, 8
        %s311 = scalar_lea.vmem [#allocation8], %s310
        %p312 = scmp.lt.s32.totalorder %s32, 0
        %s313 = scalar_select %p312, %s32, 0
        %s314 = scalar_lea.vmem %s1, %s313
        %p315 = scmp.lt.s32.totalorder %s32, 0
        %s316 = scalar_select %p315, %s32, 0
        %s317 = scalar_lea.vmem %s2, %s316
        %v318 = vld [vmem:[%s274] sm:$0xff]
        %v319 = vld [vmem:[#allocation2] sm:$0x1]
        %v321 = vlaneseq
        %v322 = vshrl.u32 %v321, 7
        %v323 = vsub.s32 0, %v322
        %v324 = vrot.slane %v319, %v323
        %v326 = vmul.f32 %v318, %v324
        %v327 = vld [vmem:[%s314] sm:$0x1]
        %v329 = vlaneseq
        %v330 = vshrl.u32 %v329, 7
        %v331 = vsub.s32 0, %v330
        %v332 = vrot.slane %v327, %v331
        %v334 = vadd.f32 %v326, %v332
        %335 = vst [vmem:[%s304] sm:$0xff] %v334
        %v336 = vld [vmem:[%s317] sm:$0x1]
        %v338 = vlaneseq
        %v339 = vshrl.u32 %v338, 7
        %v340 = vsub.s32 0, %v339
        %v341 = vrot.slane %v336, %v340
        %343 = vst [vmem:[%s311] sm:$0xff] %v341
        %s344 = sand.u32 %s155, 1
        %s345 = scalar_lea.sflag [#allocation4], %s344
        %s346 = sand.u32 %s155, 1
        %s347 = smul.addr %s346, 8
        %s348 = scalar_lea.vmem [#allocation7], %s347
        %s349 = sand.u32 %s183, 1
        %s350 = scalar_lea.sflag [#allocation9], %s349
        %s351 = sand.u32 %s183, 1
        %s352 = smul.addr %s351, 8
        %s353 = scalar_lea.vmem [#allocation8], %s352
        // Predicated region
        $region45: #{tpu_custom_call.1} parent=35 // pred_check
          %p354 = pneg %p165
        $region46: #{tpu_custom_call.1} parent=35 // pred_check_branch
          %356 = sbr.rel (%p354) target = $region48
        $region47: #{tpu_custom_call.1} parent=35 // pred_region
          %s358 = ssub.s32 128, 128
          %359 = vsyncadd %s345, %s358
          %s360 = sadd.s32 %s32, %s31
          %s361 = smul.addr %s360, 128
          %s362 = scalar_lea.hbm %s4, %s361
          %s364 = sshll.u32 %s348, 4
          %s365 = int_to_ptr.vmem [resolvable:$true] %s364
          %367 = dma.vmem_to_hbm [thread:$0]  %s365, 128, %s362, %s345
        $region48: #{tpu_custom_call.1} parent=35 // pred_fallthru
          _
        // Predicated region
        $region49: #{tpu_custom_call.1} parent=35 // pred_check
          %p368 = pneg %p193
        $region50: #{tpu_custom_call.1} parent=35 // pred_check_branch
          %370 = sbr.rel (%p368) target = $region52
        $region51: #{tpu_custom_call.1} parent=35 // pred_region
          %s372 = ssub.s32 128, 128
          %373 = vsyncadd %s350, %s372
          %s374 = sadd.s32 %s32, %s31
          %s375 = smul.addr %s374, 128
          %s376 = scalar_lea.hbm %s5, %s375
          %s378 = sshll.u32 %s353, 4
          %s379 = int_to_ptr.vmem [resolvable:$true] %s378
          %381 = dma.vmem_to_hbm [thread:$0]  %s379, 128, %s376, %s350
        $region52: #{tpu_custom_call.1} parent=35 // pred_fallthru
          _
      $region36: #{tpu_custom_call.1} parent=5 // pred_fallthru
        _
      %p382 = scmp.le.s32.totalorder 2, %s22
      // Predicated region
      $region53: #{tpu_custom_call.1} parent=5 // pred_check
        %p383 = pneg %p382
      $region54: #{tpu_custom_call.1} parent=5 // pred_check_branch
        %385 = sbr.rel (%p383) target = $region56
      $region55: #{tpu_custom_call.1} parent=5 // pred_region
        %s386 = ssub.s32 %s22, 2
        // Predicated region
        $region57: #{tpu_custom_call.1} parent=55 // pred_check
          %p387 = pneg %p171
        $region58: #{tpu_custom_call.1} parent=55 // pred_check_branch
          %389 = sbr.rel (%p387) target = $region60
        $region59: #{tpu_custom_call.1} parent=55 // pred_region
          %s390 = sand.u32 %s156, 1
          %s391 = scalar_lea.sflag [#allocation4], %s390
          %s392 = sand.u32 %s156, 1
          %s393 = smul.addr %s392, 8
          %s394 = scalar_lea.vmem [#allocation7], %s393
          %395 = dma.done %s391, 128
        $region60: #{tpu_custom_call.1} parent=55 // pred_fallthru
          _
        // Predicated region
        $region61: #{tpu_custom_call.1} parent=55 // pred_check
          %p396 = pneg %p199
        $region62: #{tpu_custom_call.1} parent=55 // pred_check_branch
          %398 = sbr.rel (%p396) target = $region64
        $region63: #{tpu_custom_call.1} parent=55 // pred_region
          %s399 = sand.u32 %s184, 1
          %s400 = scalar_lea.sflag [#allocation9], %s399
          %s401 = sand.u32 %s184, 1
          %s402 = smul.addr %s401, 8
          %s403 = scalar_lea.vmem [#allocation8], %s402
          %404 = dma.done %s400, 128
        $region64: #{tpu_custom_call.1} parent=55 // pred_fallthru
          _
      $region56: #{tpu_custom_call.1} parent=5 // pred_fallthru
        _
    $region6: #{tpu_custom_call.1} parent=1 // loop_footer
      %s26 = sadd.s32 1, %s22
    $region7: #{tpu_custom_call.1} parent=1 // loop_footer_branch
      %21 = sbr.rel target = $region3
    $region8: #{tpu_custom_call.1} parent=1 // loop_exit
      _
    %405 = vsyncpa [#allocation3], 1
    %s406 = scalar_lea.sflag [#allocation3], 1
    %407 = vsyncpa %s406, 1
    %408 = vsyncpa [#allocation6], 1
    %s409 = scalar_lea.sflag [#allocation6], 1
    %410 = vsyncpa %s409, 1
    %411 = vsyncpa [#allocation4], 1
    %s412 = scalar_lea.sflag [#allocation4], 1
    %413 = vsyncpa %s412, 1
    %414 = vsyncpa [#allocation9], 1
    %s415 = scalar_lea.sflag [#allocation9], 1
    %416 = vsyncpa %s415, 1

</llo_original>
